<compile_context>
chip_gen: v7x
topology: tpu7x:2x2x1
jax: 0.10.0
libtpu: 0.0.40
codegen_flags: <defaults>
</compile_context>

<pallas_src>
import jax
import jax.numpy as jnp
from jax import lax
from jax.experimental import pallas as pl
from jax.experimental.pallas import tpu as pltpu

NUM_LATENT_FEATURE = 64
_DEFAULT_BLOCK_ROWS = 32768            # logical x rows per grid step
_VMEM_LIMIT_BYTES = 40 * 1024 * 1024   # < v7x 64 MiB physical; plenty on v5e/v6e


def _round_up(n: int, m: int) -> int:
    return ((n + m - 1) // m) * m


def reg_kernel(x_ref, w_ref, b_ref, o_ref):
    # x_ref: (tb, Fp) VMEM   -- Fp = pack * 64 (packed rows fill all 128 lanes)
    # w_ref: (P, Fp)  VMEM   -- resident block-diagonal weight
    # b_ref: (1,)     SMEM   -- scalar bias
    # o_ref: (P, tb)  VMEM   -- lane-dense output slab (unmasked vst)
    y = lax.dot_general(
        w_ref[...], x_ref[...],
        dimension_numbers=(((1,), (1,)), ((), ())),   # w @ x^T -> (P, tb)
        preferred_element_type=jnp.float32,
    )
    o_ref[...] = jnp.maximum(y + b_ref[0], 0.0).astype(o_ref.dtype)


def _run(x_view, w_view, b, tb):
    """pallas_call over a (rows, feat) view; returns a (P, n_tiles*tb) lane-dense slab."""
    rows, feat = x_view.shape
    p = w_view.shape[0]

    n_tiles = -(-rows // tb)
    # Prefer an even tile count (>= 2) so v7x's two TensorCores stay balanced.
    if n_tiles > 1 and n_tiles % 2:
        tb = _round_up(-(-rows // (n_tiles + 1)), 128)
        n_tiles = -(-rows // tb)
    out_lanes = n_tiles * tb   # only the (tiny) output is tile-padded; caller slices

    cost = pl.CostEstimate(
        flops=2 * rows * feat * p,
        transcendentals=0,
        bytes_accessed=rows * feat * x_view.dtype.itemsize
        + out_lanes * p * 4 + p * feat * 4,
    )

    return pl.pallas_call(
        reg_kernel,
        out_shape=jax.ShapeDtypeStruct((p, out_lanes), jnp.float32),
        grid=(n_tiles,),
        in_specs=[
            pl.BlockSpec((tb, feat), lambda i: (i, 0)),    # streamed x tiles (partial tail OK)
            pl.BlockSpec((p, feat), lambda i: (0, 0)),     # resident weight
            pl.BlockSpec(memory_space=pltpu.MemorySpace.SMEM),  # scalar bias
        ],
        out_specs=pl.BlockSpec((p, tb), lambda i: (0, i)),  # lane-dense output
        compiler_params=pltpu.CompilerParams(
            dimension_semantics=("parallel",),              # shard batch tiles across TCs
            vmem_limit_bytes=_VMEM_LIMIT_BYTES,
        ),
        cost_estimate=cost,
    )(x_view, w_view, b)


def reg_model_forward(x, w, b, *, block_rows=_DEFAULT_BLOCK_ROWS):
    """Pallas equivalent of F.relu(nn.Linear(64, 1)(x)). Returns (B, 1) float32."""
    B, F = x.shape
    assert F == NUM_LATENT_FEATURE
    if B == 0:
        return jnp.zeros((0, 1), jnp.float32)

    pack = 2 if B % 2 == 0 else 1
    if pack == 2:
        # Pack two logical rows per 128 lanes (free row-major reshape, no HBM copy).
        bp = B // 2
        x_view = x.reshape(bp, pack * NUM_LATENT_FEATURE)
        zero = jnp.zeros_like(w)
        w_view = jnp.concatenate(
            [jnp.concatenate([w, zero], axis=1),
             jnp.concatenate([zero, w], axis=1)], axis=0)   # (2, 128) block-diag
    else:
        # Odd batch: fall back to the unpacked (B, 64) layout (pack factor 1).
        bp = B
        x_view = x
        w_view = w                                          # (1, 64)

    tb = min(_round_up(block_rows // pack, 128), _round_up(bp, 128))

    out = _run(x_view, w_view, b, tb)   # (pack, >= bp) lane-dense
    out = out[:, :bp]                   # drop tile padding (tail columns are garbage)
    # Column j of the slab holds logical rows [pack*j, pack*j+1]; un-interleave.
    return out.T.reshape(B, 1)


def init_params(key):
    # Mirror torch.nn.Linear default init: U(-1/sqrt(fan_in), 1/sqrt(fan_in)).
    kw, kb = jax.random.split(key)
    bound = 1.0 / jnp.sqrt(jnp.float32(NUM_LATENT_FEATURE))
    w = jax.random.uniform(kw, (1, NUM_LATENT_FEATURE), jnp.float32, -bound, bound)
    b = jax.random.uniform(kb, (1,), jnp.float32, -bound, bound)
    return w, b


if __name__ == "__main__":
    key = jax.random.PRNGKey(0)
    kx, kp = jax.random.split(key)
    w, b = init_params(kp)

    # Exercise both paths: even batch (packed 128-lane rows) and odd batch (fallback).
    for B in (8, 7):
        x = jax.random.normal(jax.random.fold_in(kx, B),
                              (B, NUM_LATENT_FEATURE), jnp.float32)
        out = reg_model_forward(x, w, b)
        jax.block_until_ready(out)

        ref = jnp.maximum(x @ w.T + b[None, :], 0.0)   # plain-JAX reference
        assert out.shape == (B, 1)
        assert jnp.allclose(out, ref, atol=1e-5, rtol=1e-5)

    print("KERNEL_OK")
</pallas_src>

<mosaic_0001>
module attributes {stable_mosaic.version = 11 : i64} {
  func.func @reg_kernel(%arg0: i32, %arg1: memref<128x128xf32, #tpu.memory_space<vmem>>, %arg2: memref<2x128xf32, #tpu.memory_space<vmem>>, %arg3: memref<1xf32, #tpu.memory_space<smem>>, %arg4: memref<2x128xf32, #tpu.memory_space<vmem>>) attributes {dimension_semantics = [#tpu.dimension_semantics<parallel>], iteration_bounds = array<i64: 1>, scalar_prefetch = 0 : i64, scratch_operands = 0 : i64, tpu.core_type = #tpu.core_type<tc>, window_params = [{transform_indices = @transform_0, window_bounds = array<i64: 128, 128>}, {pipeline_mode = #tpu.pipeline_mode<synchronous>, transform_indices = @transform_1, window_bounds = array<i64: 2, 128>}, {transform_indices = @transform_2, window_bounds = array<i64: 1>}, {transform_indices = @transform_3, window_bounds = array<i64: 2, 128>}]} {
    %c0 = arith.constant 0 : index
    %c0_0 = arith.constant 0 : index
    %0 = vector.load %arg2[%c0, %c0_0] : memref<2x128xf32, #tpu.memory_space<vmem>>, vector<2x128xf32>
    %c0_1 = arith.constant 0 : index
    %c0_2 = arith.constant 0 : index
    %1 = vector.load %arg1[%c0_1, %c0_2] : memref<128x128xf32, #tpu.memory_space<vmem>>, vector<128x128xf32>
    %cst = arith.constant dense<0.000000e+00> : vector<2x128xf32>
    %2 = tpu.matmul %0, %1, %cst {dimension_numbers = #tpu.dot_dimension_numbers<[1], [1], [0], [0], [0, 0, 1, 0], [], []>} : vector<2x128xf32>, vector<128x128xf32>, vector<2x128xf32> -> vector<2x128xf32>
    %c0_3 = arith.constant 0 : index
    %3 = memref.load %arg3[%c0_3] : memref<1xf32, #tpu.memory_space<smem>>
    %4 = vector.broadcast %3 : f32 to vector<2x128xf32>
    %5 = arith.addf %2, %4 : vector<2x128xf32>
    %cst_4 = arith.constant 0.000000e+00 : f32
    %6 = vector.broadcast %cst_4 : f32 to vector<2x128xf32>
    %7 = arith.maximumf %5, %6 : vector<2x128xf32>
    %c0_5 = arith.constant 0 : index
    %c0_6 = arith.constant 0 : index
    %8 = vector.load %arg4[%c0_5, %c0_6] : memref<2x128xf32, #tpu.memory_space<vmem>>, vector<2x128xf32>
    tpu.vector_store %arg4[%c0_5, %c0_6], %7 {strides = array<i32>} : memref<2x128xf32, #tpu.memory_space<vmem>>, vector<2x128xf32>,
    return
  }
  func.func @transform_0(%arg0: i32) -> (i32, i32) {
    %c0_i32 = arith.constant 0 : i32
    %c0_i32_0 = arith.constant 0 : i32
    return %arg0, %c0_i32 : i32, i32
  }
  func.func @transform_1(%arg0: i32) -> (i32, i32) {
    %c0_i32 = arith.constant 0 : i32
    %c0_i32_0 = arith.constant 0 : i32
    %c0_i32_1 = arith.constant 0 : i32
    return %c0_i32, %c0_i32_0 : i32, i32
  }
  func.func @transform_2(%arg0: i32) -> i32 {
    %c0_i32 = arith.constant 0 : i32
    %c0_i32_0 = arith.constant 0 : i32
    return %c0_i32 : i32
  }
  func.func @transform_3(%arg0: i32) -> (i32, i32) {
    %c0_i32 = arith.constant 0 : i32
    %c0_i32_0 = arith.constant 0 : i32
    return %c0_i32, %arg0 : i32, i32
  }
}

</mosaic_0001>

<llo_original>
// kernel: tpu_custom_call.1
$region0: #{tpu_custom_call.1}
  #allocation0 [shape = 'u32[]', space=smem, size = 0x4, offset = 0x4, fixed_abs, tag = 'smem constant byte address 0x4 - core index']
  #allocation1 [shape = 'u32[144,128]{1,0:T(1,128)}', space=vmem, size = 0x12000, scoped, tag = 'internal scratch']
  #allocation2 [shape = 'f32[1]{0:T(128)S(6)}', space=smem, size = 0x200, scoped, tag = 'scoped memory for tpu_custom_call.1']
  %s0 = inlined_call_operand.hbm [shape: f32[4,128], index: 0, kind: input, shape index: {}]
  %s1 = inlined_call_operand.vmem [shape: f32[2,128], index: 1, kind: input, shape index: {}]
  %s2 = inlined_call_operand.<no memory space> [shape: f32[1], index: 2, kind: input, shape index: {}]
  %s3 = inlined_call_operand.hbm [shape: f32[2,128], index: 3, kind: output, shape index: {}]
  %s4 = sld [smem:[#allocation0]]
  $region26: #{tpu_custom_call.1} parent=0
    _
  %s6 = ssub.s32 1, %s4
  %s7 = scalar_select 0, %s6, %s4
  %8 = sst [smem:[#allocation2]] %s2
  $region1: #{tpu_custom_call.1} parent=0
    #allocation3 [shape = 'u8[65536]{0}', space=vmem, size = 0x10000, scoped, tag = 'input window, operand 0, single buffered']
    #allocation4 [shape = 's32[1]{0}', space=sflag, size = 0x4, scoped, tag = 'scoped memory for tpu_custom_call.1']
    #allocation5 [shape = 's32[1]{0}', space=sflag, size = 0x4, scoped, tag = 'scoped memory for tpu_custom_call.1']
    #allocation6 [shape = 'u8[1024]{0}', space=vmem, size = 0x400, scoped, tag = 'output window, operand 0, single buffered']
    %9 = vsyncpa [#allocation4], 0
    %10 = vsyncpa [#allocation5], 0
    // Predicated region
    $region2: #{tpu_custom_call.1} parent=1 // pred_check
      _
    $region3: #{tpu_custom_call.1} parent=1 // pred_check_branch
      %12 = sbr.rel (0) target = $region5
    $region4: #{tpu_custom_call.1} parent=1 // pred_region
      %s14 = ssub.s32 2048, 64
      %15 = vsyncadd [#allocation4], %s14
      %s16 = sshll.u32 [#allocation3], 4
      %s17 = int_to_ptr.vmem [resolvable:$true] %s16
      %22 = dma.hbm_to_vmem [thread:$0]  %s0, 64, %s17, [#allocation4], 64, 64, 4
    $region5: #{tpu_custom_call.1} parent=1 // pred_fallthru
      _
    // Predicated region
    $region6: #{tpu_custom_call.1} parent=1 // pred_check
      _
    $region7: #{tpu_custom_call.1} parent=1 // pred_check_branch
      %24 = sbr.rel (0) target = $region9
    $region8: #{tpu_custom_call.1} parent=1 // pred_region
      _
    $region9: #{tpu_custom_call.1} parent=1 // pred_fallthru
      _
    // Predicated region
    $region10: #{tpu_custom_call.1} parent=1 // pred_check
      _
    $region11: #{tpu_custom_call.1} parent=1 // pred_check_branch
      %26 = sbr.rel (0) target = $region13
    $region12: #{tpu_custom_call.1} parent=1 // pred_region
      _
    $region13: #{tpu_custom_call.1} parent=1 // pred_fallthru
      _
    // Predicated region
    $region14: #{tpu_custom_call.1} parent=1 // pred_check
      _
    $region15: #{tpu_custom_call.1} parent=1 // pred_check_branch
      %28 = sbr.rel (0) target = $region17
    $region16: #{tpu_custom_call.1} parent=1 // pred_region
      %29 = dma.done [#allocation4], 2048
    $region17: #{tpu_custom_call.1} parent=1 // pred_fallthru
      _
    %v30 = vld [vmem:[%s1] sm:$0x3]
    %v31 = vld [vmem:[#allocation3] sm:$0xff]
    %v32 = vld [vmem:[#allocation3 + $0x8] sm:$0xff]
    %v33 = vld [vmem:[#allocation3 + $0x10] sm:$0xff]
    %v34 = vld [vmem:[#allocation3 + $0x18] sm:$0xff]
    %v35 = vld [vmem:[#allocation3 + $0x20] sm:$0xff]
    %v36 = vld [vmem:[#allocation3 + $0x28] sm:$0xff]
    %v37 = vld [vmem:[#allocation3 + $0x30] sm:$0xff]
    %v38 = vld [vmem:[#allocation3 + $0x38] sm:$0xff]
    %v39 = vld [vmem:[#allocation3 + $0x40] sm:$0xff]
    %v40 = vld [vmem:[#allocation3 + $0x48] sm:$0xff]
    %v41 = vld [vmem:[#allocation3 + $0x50] sm:$0xff]
    %v42 = vld [vmem:[#allocation3 + $0x58] sm:$0xff]
    %v43 = vld [vmem:[#allocation3 + $0x60] sm:$0xff]
    %v44 = vld [vmem:[#allocation3 + $0x68] sm:$0xff]
    %v45 = vld [vmem:[#allocation3 + $0x70] sm:$0xff]
    %v46 = vld [vmem:[#allocation3 + $0x78] sm:$0xff]
    %s47 = sld [smem:[#allocation2]]
    %v48 = vstv %s47
    %49 = vmatprep.subr.mxu0 0.0
    %50 = vmatpush1.xpose.msra.mxu0 %v31
    %51 = vmatprep.subr.mxu0 0.0
    %52 = vmatpush1.xpose.msra.mxu0 %v32
    %53 = vmatprep.subr.mxu0 0.0
    %54 = vmatpush1.xpose.msra.mxu0 %v33
    %55 = vmatprep.subr.mxu0 0.0
    %56 = vmatpush1.xpose.msra.mxu0 %v34
    %57 = vmatprep.subr.mxu0 0.0
    %58 = vmatpush1.xpose.msra.mxu0 %v35
    %59 = vmatprep.subr.mxu0 0.0
    %60 = vmatpush1.xpose.msra.mxu0 %v36
    %61 = vmatprep.subr.mxu0 0.0
    %62 = vmatpush1.xpose.msra.mxu0 %v37
    %63 = vmatprep.subr.mxu0 0.0
    %64 = vmatpush1.xpose.msra.mxu0 %v38
    %65 = vmatprep.subr.mxu0 0.0
    %66 = vmatpush1.xpose.msra.mxu0 %v39
    %67 = vmatprep.subr.mxu0 0.0
    %68 = vmatpush1.xpose.msra.mxu0 %v40
    %69 = vmatprep.subr.mxu0 0.0
    %70 = vmatpush1.xpose.msra.mxu0 %v41
    %71 = vmatprep.subr.mxu0 0.0
    %72 = vmatpush1.xpose.msra.mxu0 %v42
    %73 = vmatprep.subr.mxu0 0.0
    %74 = vmatpush1.xpose.msra.mxu0 %v43
    %75 = vmatprep.subr.mxu0 0.0
    %76 = vmatpush1.xpose.msra.mxu0 %v44
    %77 = vmatprep.subr.mxu0 0.0
    %78 = vmatpush1.xpose.msra.mxu0 %v45
    %79 = vmatprep.subr.mxu0 0.0
    %80 = vmatpush1.xpose.msra.mxu0 %v46
    %81 = vmatprep.subr.mxu0 0.0
    %82 = vmatpush1.xpose.msra.mxu0 0.0
    %83 = vmatprep.subr.mxu0 0.0
    %84 = vmatpush1.xpose.msra.mxu0 0.0
    %85 = vmatprep.subr.mxu0 0.0
    %86 = vmatpush1.xpose.msra.mxu0 0.0
    %87 = vmatprep.subr.mxu0 0.0
    %88 = vmatpush1.xpose.msra.mxu0 0.0
    %89 = vmatprep.subr.mxu0 0.0
    %90 = vmatpush1.xpose.msra.mxu0 0.0
    %91 = vmatprep.subr.mxu0 0.0
    %92 = vmatpush1.xpose.msra.mxu0 0.0
    %93 = vmatprep.subr.mxu0 0.0
    %94 = vmatpush1.xpose.msra.mxu0 0.0
    %95 = vmatprep.subr.mxu0 0.0
    %96 = vmatpush1.xpose.msra.mxu0 0.0
    %97 = vmatprep.subr.mxu0 0.0
    %98 = vmatpush1.xpose.msra.mxu0 0.0
    %99 = vmatprep.subr.mxu0 0.0
    %100 = vmatpush1.xpose.msra.mxu0 0.0
    %101 = vmatprep.subr.mxu0 0.0
    %102 = vmatpush1.xpose.msra.mxu0 0.0
    %103 = vmatprep.subr.mxu0 0.0
    %104 = vmatpush1.xpose.msra.mxu0 0.0
    %105 = vmatprep.subr.mxu0 0.0
    %106 = vmatpush1.xpose.msra.mxu0 0.0
    %107 = vmatprep.subr.mxu0 0.0
    %108 = vmatpush1.xpose.msra.mxu0 0.0
    %109 = vmatprep.subr.mxu0 0.0
    %110 = vmatpush1.xpose.msra.mxu0 0.0
    %111 = vmatprep.subr.mxu0 0.0
    %112 = vmatpush1.xpose.msra.mxu0 0.0
    %113 = vmatprep.mubr.f32.mxu0 0.0
    %114 = vmatmul.mubr.f32.gmra.mrb[0].mxu0 %v30
    %v115 = vpop.f32.mrb[0].mxu0
    %v116 = vadd.f32 %v48, %v115
    %v117 = vpop.f32.mrb[0].mxu0
    %118 = vdwg.mxu0
    %v119 = vmax.f32 %v116, 0.0
    %120 = vst [vmem:[#allocation6] sm:$0x3] %v119
    // Predicated region
    $region18: #{tpu_custom_call.1} parent=1 // pred_check
      _
    $region19: #{tpu_custom_call.1} parent=1 // pred_check_branch
      %122 = sbr.rel (0) target = $region21
    $region20: #{tpu_custom_call.1} parent=1 // pred_region
      %s124 = ssub.s32 32, 32
      %125 = vsyncadd [#allocation5], %s124
      %s127 = sshll.u32 [#allocation6], 4
      %s128 = int_to_ptr.vmem [resolvable:$true] %s127
      %130 = dma.vmem_to_hbm [thread:$0]  %s128, 32, %s3, [#allocation5]
    $region21: #{tpu_custom_call.1} parent=1 // pred_fallthru
      _
    // Predicated region
    $region22: #{tpu_custom_call.1} parent=1 // pred_check
      _
    $region23: #{tpu_custom_call.1} parent=1 // pred_check_branch
      %132 = sbr.rel (0) target = $region25
    $region24: #{tpu_custom_call.1} parent=1 // pred_region
      %133 = dma.done [#allocation5], 32
    $region25: #{tpu_custom_call.1} parent=1 // pred_fallthru
      _
    %134 = vsyncpa [#allocation4], 1
    %135 = vsyncpa [#allocation5], 1

</llo_original>
